<compile_context>
chip_gen: v6e
topology: v6e:2x2x1
jax: 0.10.0
libtpu: 0.0.40
codegen_flags: <defaults>
</compile_context>

<pallas_src>
import jax
import jax.numpy as jnp
import numpy as np
from jax.experimental import pallas as pl
from jax.experimental.pallas import tpu as pltpu


def sum_sequential_kernel(alphas_ref,   # SMEM (K,)       f32
                          x_ref,        # VMEM (B, D_in)  bf16
                          wg_ref,       # VMEM (D_in, H)  bf16
                          bg_ref,       # VMEM (1, H)     f32
                          wts_ref,      # VMEM (K, H, H)  bf16
                          bts_ref,      # VMEM (K, H)     f32
                          out_ref):     # VMEM (B, H)     out dtype
    K = wts_ref.shape[0]

    # Stage 1: g = x @ Wg + bg  (bf16 MXU inputs, f32 accumulation).
    g = (jnp.dot(x_ref[...], wg_ref[...],
                 preferred_element_type=jnp.float32)
         + bg_ref[...])
    g_bf16 = g.astype(jnp.bfloat16)

    # Combine the K transforms (linearity of the alpha-weighted sum):
    #   W_sum = sum_k alpha_k * W_k,  b_sum = sum_k alpha_k * b_k
    # f32 VPU adds over the (H, H) tiles; tiny next to the matmuls and they
    # overlap with the MXU work above.
    w_sum = alphas_ref[0] * wts_ref[0].astype(jnp.float32)       # (H, H)
    b_sum = alphas_ref[0] * bts_ref[pl.ds(0, 1), :]              # (1, H)
    for k in range(1, K):                                        # unrolled, K is static
        w_sum = w_sum + alphas_ref[k] * wts_ref[k].astype(jnp.float32)
        b_sum = b_sum + alphas_ref[k] * bts_ref[pl.ds(k, 1), :]

    # Stage 2: single MXU matmul against the combined transform.
    out = (jnp.dot(g_bf16, w_sum.astype(jnp.bfloat16),
                   preferred_element_type=jnp.float32)
           + b_sum)
    out_ref[...] = out.astype(out_ref.dtype)


def sum_sequential(x, wg, bg, wts, bts, alphas):
    """x: (B, D_in); wg: (D_in, H); bg: (1, H); wts: (K, H, H); bts: (K, H);
    alphas: (K,) float32.  Returns (B, H) in x.dtype."""
    B, _ = x.shape
    H = wg.shape[1]

    vmem = pl.BlockSpec(memory_space=pltpu.MemorySpace.VMEM)
    smem = pl.BlockSpec(memory_space=pltpu.MemorySpace.SMEM)

    # TODO(synk): for large B, add a leading "parallel" batch grid axis and
    # M-tile x/out (128 rows v5e, 256 v6e/v7x); at B=8 it is latency-bound.
    return pl.pallas_call(
        sum_sequential_kernel,
        out_shape=jax.ShapeDtypeStruct((B, H), x.dtype),
        in_specs=[smem, vmem, vmem, vmem, vmem, vmem],
        out_specs=vmem,
    )(
        alphas.astype(jnp.float32),
        x.astype(jnp.bfloat16),
        wg.astype(jnp.bfloat16),
        bg.astype(jnp.float32),
        wts.astype(jnp.bfloat16),
        bts.astype(jnp.float32),
    )


def reference(x, wg, bg, wts, bts, alphas):
    # Pure f32 reference matching the PyTorch module semantics.
    g = jnp.dot(x, wg, preferred_element_type=jnp.float32) + bg
    out = jnp.zeros_like(g)
    for i in range(wts.shape[0]):
        out = out + alphas[i] * (
            jnp.dot(g, wts[i], preferred_element_type=jnp.float32) + bts[i])
    return out.astype(x.dtype)


if __name__ == "__main__":
    B, D_IN, H, K = 8, 128, 128, 3

    key = jax.random.PRNGKey(0)
    kx, kwg, kbg, kwt, kbt = jax.random.split(key, 5)

    x = jax.random.normal(kx, (B, D_IN), dtype=jnp.float32)

    # Deterministic synthetic parameters (G: Linear(D_IN->H), T_i: Linear(H->H)).
    wg = jax.random.normal(kwg, (D_IN, H), dtype=jnp.float32) * 0.05
    bg = jax.random.normal(kbg, (1, H), dtype=jnp.float32) * 0.05
    wts = jax.random.normal(kwt, (K, H, H), dtype=jnp.float32) * 0.05
    bts = jax.random.normal(kbt, (K, H), dtype=jnp.float32) * 0.05
    alphas = jnp.array([0.5, -1.0, 2.0], dtype=jnp.float32)

    out = jax.block_until_ready(sum_sequential(x, wg, bg, wts, bts, alphas))

    ref = reference(x, wg, bg, wts, bts, alphas)
    assert out.shape == (B, H)
    # bf16 MXU inputs (f32 accumulation) vs. pure-f32 reference -> ~0.5% rel err.
    np.testing.assert_allclose(np.asarray(out), np.asarray(ref),
                               rtol=2e-2, atol=2e-2)

    print("KERNEL_OK")
</pallas_src>

<mosaic_0001>
module attributes {stable_mosaic.version = 11 : i64} {
  func.func @sum_sequential_kernel(%arg0: memref<3xf32, #tpu.memory_space<smem>>, %arg1: memref<8x128xbf16, #tpu.memory_space<vmem>>, %arg2: memref<128x128xbf16, #tpu.memory_space<vmem>>, %arg3: memref<1x128xf32, #tpu.memory_space<vmem>>, %arg4: memref<3x128x128xbf16, #tpu.memory_space<vmem>>, %arg5: memref<3x128xf32, #tpu.memory_space<vmem>>, %arg6: memref<8x128xf32, #tpu.memory_space<vmem>>) attributes {dimension_semantics = [], scalar_prefetch = 0 : i64, scratch_operands = 0 : i64, tpu.core_type = #tpu.core_type<tc>} {
    %c0 = arith.constant 0 : index
    %c0_0 = arith.constant 0 : index
    %0 = vector.load %arg1[%c0, %c0_0] : memref<8x128xbf16, #tpu.memory_space<vmem>>, vector<8x128xbf16>
    %c0_1 = arith.constant 0 : index
    %c0_2 = arith.constant 0 : index
    %1 = vector.load %arg2[%c0_1, %c0_2] : memref<128x128xbf16, #tpu.memory_space<vmem>>, vector<128x128xbf16>
    %cst = arith.constant dense<0.000000e+00> : vector<8x128xf32>
    %2 = tpu.matmul %0, %1, %cst {dimension_numbers = #tpu.dot_dimension_numbers<[1], [0], [0], [1], [0, 0, 1, 1], [], []>} : vector<8x128xbf16>, vector<128x128xbf16>, vector<8x128xf32> -> vector<8x128xf32>
    %c0_3 = arith.constant 0 : index
    %c0_4 = arith.constant 0 : index
    %3 = vector.load %arg3[%c0_3, %c0_4] : memref<1x128xf32, #tpu.memory_space<vmem>>, vector<1x128xf32>
    %4 = vector.broadcast %3 : vector<1x128xf32> to vector<8x128xf32>
    %5 = arith.addf %2, %4 : vector<8x128xf32>
    %6 = arith.truncf %5 : vector<8x128xf32> to vector<8x128xbf16>
    %c0_5 = arith.constant 0 : index
    %7 = memref.load %arg0[%c0_5] : memref<3xf32, #tpu.memory_space<smem>>
    %c0_6 = arith.constant 0 : index
    %c0_7 = arith.constant 0 : index
    %c0_8 = arith.constant 0 : index
    %8 = vector.load %arg4[%c0_6, %c0_7, %c0_8] : memref<3x128x128xbf16, #tpu.memory_space<vmem>>, vector<1x128x128xbf16>
    %9 = vector.shape_cast %8 : vector<1x128x128xbf16> to vector<128x128xbf16>
    %10 = arith.extf %9 : vector<128x128xbf16> to vector<128x128xf32>
    %11 = vector.broadcast %7 : f32 to vector<128x128xf32>
    %12 = arith.mulf %11, %10 : vector<128x128xf32>
    %c0_9 = arith.constant 0 : index
    %13 = memref.load %arg0[%c0_9] : memref<3xf32, #tpu.memory_space<smem>>
    %c0_10 = arith.constant 0 : index
    %c0_11 = arith.constant 0 : index
    %14 = vector.load %arg5[%c0_10, %c0_11] : memref<3x128xf32, #tpu.memory_space<vmem>>, vector<1x128xf32>
    %15 = vector.broadcast %13 : f32 to vector<1x128xf32>
    %16 = arith.mulf %15, %14 : vector<1x128xf32>
    %c1 = arith.constant 1 : index
    %17 = memref.load %arg0[%c1] : memref<3xf32, #tpu.memory_space<smem>>
    %c1_12 = arith.constant 1 : index
    %c0_13 = arith.constant 0 : index
    %c0_14 = arith.constant 0 : index
    %18 = vector.load %arg4[%c1_12, %c0_13, %c0_14] : memref<3x128x128xbf16, #tpu.memory_space<vmem>>, vector<1x128x128xbf16>
    %19 = vector.shape_cast %18 : vector<1x128x128xbf16> to vector<128x128xbf16>
    %20 = arith.extf %19 : vector<128x128xbf16> to vector<128x128xf32>
    %21 = vector.broadcast %17 : f32 to vector<128x128xf32>
    %22 = arith.mulf %21, %20 : vector<128x128xf32>
    %23 = arith.addf %12, %22 : vector<128x128xf32>
    %c1_15 = arith.constant 1 : index
    %24 = memref.load %arg0[%c1_15] : memref<3xf32, #tpu.memory_space<smem>>
    %c1_16 = arith.constant 1 : index
    %c0_17 = arith.constant 0 : index
    %25 = vector.load %arg5[%c1_16, %c0_17] : memref<3x128xf32, #tpu.memory_space<vmem>>, vector<1x128xf32>
    %26 = vector.broadcast %24 : f32 to vector<1x128xf32>
    %27 = arith.mulf %26, %25 : vector<1x128xf32>
    %28 = arith.addf %16, %27 : vector<1x128xf32>
    %c2 = arith.constant 2 : index
    %29 = memref.load %arg0[%c2] : memref<3xf32, #tpu.memory_space<smem>>
    %c2_18 = arith.constant 2 : index
    %c0_19 = arith.constant 0 : index
    %c0_20 = arith.constant 0 : index
    %30 = vector.load %arg4[%c2_18, %c0_19, %c0_20] : memref<3x128x128xbf16, #tpu.memory_space<vmem>>, vector<1x128x128xbf16>
    %31 = vector.shape_cast %30 : vector<1x128x128xbf16> to vector<128x128xbf16>
    %32 = arith.extf %31 : vector<128x128xbf16> to vector<128x128xf32>
    %33 = vector.broadcast %29 : f32 to vector<128x128xf32>
    %34 = arith.mulf %33, %32 : vector<128x128xf32>
    %35 = arith.addf %23, %34 : vector<128x128xf32>
    %c2_21 = arith.constant 2 : index
    %36 = memref.load %arg0[%c2_21] : memref<3xf32, #tpu.memory_space<smem>>
    %c2_22 = arith.constant 2 : index
    %c0_23 = arith.constant 0 : index
    %37 = vector.load %arg5[%c2_22, %c0_23] : memref<3x128xf32, #tpu.memory_space<vmem>>, vector<1x128xf32>
    %38 = vector.broadcast %36 : f32 to vector<1x128xf32>
    %39 = arith.mulf %38, %37 : vector<1x128xf32>
    %40 = arith.addf %28, %39 : vector<1x128xf32>
    %41 = arith.truncf %35 : vector<128x128xf32> to vector<128x128xbf16>
    %cst_24 = arith.constant dense<0.000000e+00> : vector<8x128xf32>
    %42 = tpu.matmul %6, %41, %cst_24 {dimension_numbers = #tpu.dot_dimension_numbers<[1], [0], [0], [1], [0, 0, 1, 1], [], []>} : vector<8x128xbf16>, vector<128x128xbf16>, vector<8x128xf32> -> vector<8x128xf32>
    %43 = vector.broadcast %40 : vector<1x128xf32> to vector<8x128xf32>
    %44 = arith.addf %42, %43 : vector<8x128xf32>
    %c0_25 = arith.constant 0 : index
    %c0_26 = arith.constant 0 : index
    %45 = vector.load %arg6[%c0_25, %c0_26] : memref<8x128xf32, #tpu.memory_space<vmem>>, vector<8x128xf32>
    tpu.vector_store %arg6[%c0_25, %c0_26], %44 {strides = array<i32>} : memref<8x128xf32, #tpu.memory_space<vmem>>, vector<8x128xf32>,
    return
  }
}

</mosaic_0001>

<llo_original>
// kernel: tpu_custom_call.1
$region0: #{tpu_custom_call.1}
  #allocation0 [shape = 'u32[]', space=smem, size = 0x4, offset = 0x4, fixed_abs, tag = 'smem constant byte address 0x4 - core index']
  #allocation1 [shape = 'u32[144,128]{1,0:T(1,128)}', space=vmem, size = 0x12000, scoped, tag = 'internal scratch']
  %s0 = inlined_call_operand.hbm [shape: f32[3], index: 0, kind: input, shape index: {}]
  %s1 = inlined_call_operand.hbm [shape: bf16[8,128], index: 1, kind: input, shape index: {}]
  %s2 = inlined_call_operand.hbm [shape: bf16[128,128], index: 2, kind: input, shape index: {}]
  %s3 = inlined_call_operand.vmem [shape: f32[1,128], index: 3, kind: input, shape index: {}]
  %s4 = inlined_call_operand.hbm [shape: bf16[3,128,128], index: 4, kind: input, shape index: {}]
  %s5 = inlined_call_operand.vmem [shape: f32[3,128], index: 5, kind: input, shape index: {}]
  %s6 = inlined_call_operand.hbm [shape: f32[8,128], index: 6, kind: output, shape index: {}]
  %s7 = sld [smem:[#allocation0]]
  $region50: #{tpu_custom_call.1} parent=0
    _
  %s9 = ssub.s32 1, %s7
  %s10 = scalar_select 0, %s9, %s7
  $region1: #{tpu_custom_call.1} parent=0
    #allocation2 [shape = 'u8[512]{0}', space=smem, size = 0x200, scoped, tag = 'input window, operand 0, single buffered']
    #allocation3 [shape = 's32[1]{0}', space=sflag, size = 0x4, scoped, tag = 'scoped memory for tpu_custom_call.1']
    #allocation4 [shape = 's32[1]{0}', space=sflag, size = 0x4, scoped, tag = 'scoped memory for tpu_custom_call.1']
    #allocation5 [shape = 's32[1]{0}', space=sflag, size = 0x4, scoped, tag = 'scoped memory for tpu_custom_call.1']
    #allocation6 [shape = 'u8[2048]{0}', space=vmem, size = 0x800, scoped, tag = 'input window, operand 1, single buffered']
    #allocation7 [shape = 'u8[32768]{0}', space=vmem, size = 0x8000, scoped, tag = 'input window, operand 2, single buffered']
    #allocation8 [shape = 's32[1]{0}', space=sflag, size = 0x4, scoped, tag = 'scoped memory for tpu_custom_call.1']
    #allocation9 [shape = 'u8[98304]{0}', space=vmem, size = 0x18000, scoped, tag = 'input window, operand 4, single buffered']
    #allocation10 [shape = 'u8[4096]{0}', space=vmem, size = 0x1000, scoped, tag = 'output window, operand 0, single buffered']
    %11 = vsyncpa [#allocation5], 0
    %12 = vsyncpa [#allocation3], 0
    %13 = vsyncpa [#allocation8], 0
    %14 = vsyncpa [#allocation4], 0
    // Predicated region
    $region2: #{tpu_custom_call.1} parent=1 // pred_check
      _
    $region3: #{tpu_custom_call.1} parent=1 // pred_check_branch
      %16 = sbr.rel (0) target = $region5
    $region4: #{tpu_custom_call.1} parent=1 // pred_region
      %s18 = ssub.s32 16, 16
      %19 = vsyncadd [#allocation5], %s18
      %22 = dma.hbm_to_smem %s0, 16, [#allocation2], [#allocation5]
    $region5: #{tpu_custom_call.1} parent=1 // pred_fallthru
      _
    // Predicated region
    $region6: #{tpu_custom_call.1} parent=1 // pred_check
      _
    $region7: #{tpu_custom_call.1} parent=1 // pred_check_branch
      %24 = sbr.rel (0) target = $region9
    $region8: #{tpu_custom_call.1} parent=1 // pred_region
      %s26 = ssub.s32 64, 64
      %27 = vsyncadd [#allocation3], %s26
      %s29 = sshll.u32 [#allocation6], 4
      %s30 = int_to_ptr.vmem [resolvable:$true] %s29
      %32 = dma.hbm_to_vmem [thread:$0]  %s1, 64, %s30, [#allocation3]
    $region9: #{tpu_custom_call.1} parent=1 // pred_fallthru
      _
    // Predicated region
    $region10: #{tpu_custom_call.1} parent=1 // pred_check
      _
    $region11: #{tpu_custom_call.1} parent=1 // pred_check_branch
      %34 = sbr.rel (0) target = $region13
    $region12: #{tpu_custom_call.1} parent=1 // pred_region
      %s36 = ssub.s32 1024, 1024
      %37 = vsyncadd [#allocation8], %s36
      %s38 = sshll.u32 [#allocation7], 4
      %s39 = int_to_ptr.vmem [resolvable:$true] %s38
      %44 = dma.hbm_to_vmem [thread:$0]  %s2, 1024, %s39, [#allocation8], 64, 64, 4
    $region13: #{tpu_custom_call.1} parent=1 // pred_fallthru
      _
    // Predicated region
    $region14: #{tpu_custom_call.1} parent=1 // pred_check
      _
    $region15: #{tpu_custom_call.1} parent=1 // pred_check_branch
      %46 = sbr.rel (0) target = $region17
    $region16: #{tpu_custom_call.1} parent=1 // pred_region
      _
    $region17: #{tpu_custom_call.1} parent=1 // pred_fallthru
      _
    // Predicated region
    $region18: #{tpu_custom_call.1} parent=1 // pred_check
      _
    $region19: #{tpu_custom_call.1} parent=1 // pred_check_branch
      %48 = sbr.rel (0) target = $region21
    $region20: #{tpu_custom_call.1} parent=1 // pred_region
      %s50 = ssub.s32 3072, 3072
      %51 = vsyncadd [#allocation8], %s50
      %s52 = sshll.u32 [#allocation9], 4
      %s53 = int_to_ptr.vmem [resolvable:$true] %s52
      %58 = dma.hbm_to_vmem [thread:$0]  %s4, 3072, %s53, [#allocation8], 64, 64, 4
    $region21: #{tpu_custom_call.1} parent=1 // pred_fallthru
      _
    // Predicated region
    $region22: #{tpu_custom_call.1} parent=1 // pred_check
      _
    $region23: #{tpu_custom_call.1} parent=1 // pred_check_branch
      %60 = sbr.rel (0) target = $region25
    $region24: #{tpu_custom_call.1} parent=1 // pred_region
      _
    $region25: #{tpu_custom_call.1} parent=1 // pred_fallthru
      _
    // Predicated region
    $region26: #{tpu_custom_call.1} parent=1 // pred_check
      _
    $region27: #{tpu_custom_call.1} parent=1 // pred_check_branch
      %62 = sbr.rel (0) target = $region29
    $region28: #{tpu_custom_call.1} parent=1 // pred_region
      %63 = dma.done [#allocation5], 16
    $region29: #{tpu_custom_call.1} parent=1 // pred_fallthru
      _
    // Predicated region
    $region30: #{tpu_custom_call.1} parent=1 // pred_check
      _
    $region31: #{tpu_custom_call.1} parent=1 // pred_check_branch
      %65 = sbr.rel (0) target = $region33
    $region32: #{tpu_custom_call.1} parent=1 // pred_region
      %66 = dma.done [#allocation3], 64
    $region33: #{tpu_custom_call.1} parent=1 // pred_fallthru
      _
    // Predicated region
    $region34: #{tpu_custom_call.1} parent=1 // pred_check
      _
    $region35: #{tpu_custom_call.1} parent=1 // pred_check_branch
      %68 = sbr.rel (0) target = $region37
    $region36: #{tpu_custom_call.1} parent=1 // pred_region
      %69 = dma.done [#allocation8], 1024
    $region37: #{tpu_custom_call.1} parent=1 // pred_fallthru
      _
    // Predicated region
    $region38: #{tpu_custom_call.1} parent=1 // pred_check
      _
    $region39: #{tpu_custom_call.1} parent=1 // pred_check_branch
      %71 = sbr.rel (0) target = $region41
    $region40: #{tpu_custom_call.1} parent=1 // pred_region
      %72 = dma.done [#allocation8], 3072
    $region41: #{tpu_custom_call.1} parent=1 // pred_fallthru
      _
    %73 = sfence
    %v75 = vld [vmem:[#allocation6] sm:$0xf]
    %v76 = vld [vmem:[#allocation7] sm:$0xf]
    %v77 = vld [vmem:[#allocation7 + $0x4] sm:$0xf]
    %v78 = vld [vmem:[#allocation7 + $0x8] sm:$0xf]
    %v79 = vld [vmem:[#allocation7 + $0xc] sm:$0xf]
    %v80 = vld [vmem:[#allocation7 + $0x10] sm:$0xf]
    %v81 = vld [vmem:[#allocation7 + $0x14] sm:$0xf]
    %v82 = vld [vmem:[#allocation7 + $0x18] sm:$0xf]
    %v83 = vld [vmem:[#allocation7 + $0x1c] sm:$0xf]
    %v84 = vld [vmem:[#allocation7 + $0x20] sm:$0xf]
    %v85 = vld [vmem:[#allocation7 + $0x24] sm:$0xf]
    %v86 = vld [vmem:[#allocation7 + $0x28] sm:$0xf]
    %v87 = vld [vmem:[#allocation7 + $0x2c] sm:$0xf]
    %v88 = vld [vmem:[#allocation7 + $0x30] sm:$0xf]
    %v89 = vld [vmem:[#allocation7 + $0x34] sm:$0xf]
    %v90 = vld [vmem:[#allocation7 + $0x38] sm:$0xf]
    %v91 = vld [vmem:[#allocation7 + $0x3c] sm:$0xf]
    %v92 = vld [vmem:[%s3] sm:$0x1]
    %v94 = vlaneseq
    %v95 = vshrl.u32 %v94, 7
    %v96 = vsub.s32 0, %v95
    %v97 = vrot.slane %v92, %v96
    %v115 = vunpack.c.l.b16 %v76
    %v116 = vunpack.c.l.b16 %v77
    %v117 = vunpack.c.l.b16 %v78
    %v118 = vunpack.c.l.b16 %v79
    %v119 = vunpack.c.l.b16 %v80
    %v120 = vunpack.c.l.b16 %v81
    %v121 = vunpack.c.l.b16 %v82
    %v122 = vunpack.c.l.b16 %v83
    %v123 = vunpack.c.l.b16 %v84
    %v124 = vunpack.c.l.b16 %v85
    %v125 = vunpack.c.l.b16 %v86
    %v126 = vunpack.c.l.b16 %v87
    %v127 = vunpack.c.l.b16 %v88
    %v128 = vunpack.c.l.b16 %v89
    %v129 = vunpack.c.l.b16 %v90
    %v130 = vunpack.c.l.b16 %v91
    %v131 = vpack.c.b16 %v116, %v115
    %v132 = vpack.c.b16 %v118, %v117
    %v133 = vpack.c.b16 %v120, %v119
    %v134 = vpack.c.b16 %v122, %v121
    %v135 = vpack.c.b16 %v124, %v123
    %v136 = vpack.c.b16 %v126, %v125
    %v137 = vpack.c.b16 %v128, %v127
    %v138 = vpack.c.b16 %v130, %v129
    %147 = vmatprep.subr.bf16.mxu0 0
    %148 = vmatpush1.bf16.msra.mxu0 %v138
    %149 = vmatprep.subr.bf16.mxu0 0
    %150 = vmatpush1.bf16.msra.mxu0 %v137
    %151 = vmatprep.subr.bf16.mxu0 0
    %152 = vmatpush1.bf16.msra.mxu0 %v136
    %153 = vmatprep.subr.bf16.mxu0 0
    %154 = vmatpush1.bf16.msra.mxu0 %v135
    %155 = vmatprep.subr.bf16.mxu0 0
    %156 = vmatpush1.bf16.msra.mxu0 %v134
    %157 = vmatprep.subr.bf16.mxu0 0
    %158 = vmatpush1.bf16.msra.mxu0 %v133
    %159 = vmatprep.subr.bf16.mxu0 0
    %160 = vmatpush1.bf16.msra.mxu0 %v132
    %161 = vmatprep.subr.bf16.mxu0 0
    %162 = vmatpush1.bf16.msra.mxu0 %v131
    %163 = vmatprep.subr.bf16.mxu0 0
    %164 = vmatpush2.bf16.msra.mxu0 0
    %165 = vmatprep.subr.bf16.mxu0 0
    %166 = vmatpush2.bf16.msra.mxu0 0
    %167 = vmatprep.subr.bf16.mxu0 0
    %168 = vmatpush2.bf16.msra.mxu0 0
    %169 = vmatprep.subr.bf16.mxu0 0
    %170 = vmatpush2.bf16.msra.mxu0 0
    %171 = vmatprep.subr.bf16.mxu0 0
    %172 = vmatpush2.bf16.msra.mxu0 0
    %173 = vmatprep.subr.bf16.mxu0 0
    %174 = vmatpush2.bf16.msra.mxu0 0
    %175 = vmatprep.subr.bf16.mxu0 0
    %176 = vmatpush2.bf16.msra.mxu0 0
    %177 = vmatprep.subr.bf16.mxu0 0
    %178 = vmatpush2.bf16.msra.mxu0 0
    %179 = vmatprep.mubr.bf16.mxu0 0
    %180 = vmatmul.mubr.bf16.gmra.mxu0 %v75
    %v181 = vpop.f32.mrf.mxu0
    %v182 = vadd.f32 %v97, %v181
    %v183 = vpop.f32.mrf.mxu0
    %v184 = vpop.f32.mrf.mxu0
    %v185 = vpop.f32.mrf.mxu0
    %186 = vdwg.mxu0
    %v187 = vpack.c.bf16 %v182, %v182
    %s188 = sld [smem:[#allocation2]]
    %v189 = vld [vmem:[#allocation9] sm:$0xf]
    %v190 = vld [vmem:[#allocation9 + $0x4] sm:$0xf]
    %v191 = vld [vmem:[#allocation9 + $0x8] sm:$0xf]
    %v192 = vld [vmem:[#allocation9 + $0xc] sm:$0xf]
    %v193 = vld [vmem:[#allocation9 + $0x10] sm:$0xf]
    %v194 = vld [vmem:[#allocation9 + $0x14] sm:$0xf]
    %v195 = vld [vmem:[#allocation9 + $0x18] sm:$0xf]
    %v196 = vld [vmem:[#allocation9 + $0x1c] sm:$0xf]
    %v197 = vld [vmem:[#allocation9 + $0x20] sm:$0xf]
    %v198 = vld [vmem:[#allocation9 + $0x24] sm:$0xf]
    %v199 = vld [vmem:[#allocation9 + $0x28] sm:$0xf]
    %v200 = vld [vmem:[#allocation9 + $0x2c] sm:$0xf]
    %v201 = vld [vmem:[#allocation9 + $0x30] sm:$0xf]
    %v202 = vld [vmem:[#allocation9 + $0x34] sm:$0xf]
    %v203 = vld [vmem:[#allocation9 + $0x38] sm:$0xf]
    %v204 = vld [vmem:[#allocation9 + $0x3c] sm:$0xf]
    %v205 = vunpack.c.l.bf16 %v189
    %v206 = vunpack.c.l.bf16 %v190
    %v207 = vunpack.c.l.bf16 %v191
    %v208 = vunpack.c.l.bf16 %v192
    %v209 = vunpack.c.l.bf16 %v193
    %v210 = vunpack.c.l.bf16 %v194
    %v211 = vunpack.c.l.bf16 %v195
    %v212 = vunpack.c.l.bf16 %v196
    %v213 = vunpack.c.l.bf16 %v197
    %v214 = vunpack.c.l.bf16 %v198
    %v215 = vunpack.c.l.bf16 %v199
    %v216 = vunpack.c.l.bf16 %v200
    %v217 = vunpack.c.l.bf16 %v201
    %v218 = vunpack.c.l.bf16 %v202
    %v219 = vunpack.c.l.bf16 %v203
    %v220 = vunpack.c.l.bf16 %v204
    %v221 = vstv %s188
    %v222 = vmul.f32 %v221, %v205
    %v223 = vmul.f32 %v221, %v206
    %v224 = vmul.f32 %v221, %v207
    %v225 = vmul.f32 %v221, %v208
    %v226 = vmul.f32 %v221, %v209
    %v227 = vmul.f32 %v221, %v210
    %v228 = vmul.f32 %v221, %v211
    %v229 = vmul.f32 %v221, %v212
    %v230 = vmul.f32 %v221, %v213
    %v231 = vmul.f32 %v221, %v214
    %v232 = vmul.f32 %v221, %v215
    %v233 = vmul.f32 %v221, %v216
    %v234 = vmul.f32 %v221, %v217
    %v235 = vmul.f32 %v221, %v218
    %v236 = vmul.f32 %v221, %v219
    %v237 = vmul.f32 %v221, %v220
    %v238 = vld [vmem:[%s5] sm:$0x1]
    %v239 = vmul.f32 %v221, %v238
    %s240 = sld [smem:[#allocation2 + $0x1]]
    %s241 = scalar_lea.vmem [#allocation9], 64
    %v242 = vld [vmem:[%s241] sm:$0xf]
    %v243 = vld [vmem:[%s241 + $0x4] sm:$0xf]
    %v244 = vld [vmem:[%s241 + $0x8] sm:$0xf]
    %v245 = vld [vmem:[%s241 + $0xc] sm:$0xf]
    %v246 = vld [vmem:[%s241 + $0x10] sm:$0xf]
    %v247 = vld [vmem:[%s241 + $0x14] sm:$0xf]
    %v248 = vld [vmem:[%s241 + $0x18] sm:$0xf]
    %v249 = vld [vmem:[%s241 + $0x1c] sm:$0xf]
    %v250 = vld [vmem:[%s241 + $0x20] sm:$0xf]
    %v251 = vld [vmem:[%s241 + $0x24] sm:$0xf]
    %v252 = vld [vmem:[%s241 + $0x28] sm:$0xf]
    %v253 = vld [vmem:[%s241 + $0x2c] sm:$0xf]
    %v254 = vld [vmem:[%s241 + $0x30] sm:$0xf]
    %v255 = vld [vmem:[%s241 + $0x34] sm:$0xf]
    %v256 = vld [vmem:[%s241 + $0x38] sm:$0xf]
    %v257 = vld [vmem:[%s241 + $0x3c] sm:$0xf]
    %v258 = vunpack.c.l.bf16 %v242
    %v259 = vunpack.c.l.bf16 %v243
    %v260 = vunpack.c.l.bf16 %v244
    %v261 = vunpack.c.l.bf16 %v245
    %v262 = vunpack.c.l.bf16 %v246
    %v263 = vunpack.c.l.bf16 %v247
    %v264 = vunpack.c.l.bf16 %v248
    %v265 = vunpack.c.l.bf16 %v249
    %v266 = vunpack.c.l.bf16 %v250
    %v267 = vunpack.c.l.bf16 %v251
    %v268 = vunpack.c.l.bf16 %v252
    %v269 = vunpack.c.l.bf16 %v253
    %v270 = vunpack.c.l.bf16 %v254
    %v271 = vunpack.c.l.bf16 %v255
    %v272 = vunpack.c.l.bf16 %v256
    %v273 = vunpack.c.l.bf16 %v257
    %v274 = vstv %s240
    %v275 = vmul.f32 %v274, %v258
    %v276 = vmul.f32 %v274, %v259
    %v277 = vmul.f32 %v274, %v260
    %v278 = vmul.f32 %v274, %v261
    %v279 = vmul.f32 %v274, %v262
    %v280 = vmul.f32 %v274, %v263
    %v281 = vmul.f32 %v274, %v264
    %v282 = vmul.f32 %v274, %v265
    %v283 = vmul.f32 %v274, %v266
    %v284 = vmul.f32 %v274, %v267
    %v285 = vmul.f32 %v274, %v268
    %v286 = vmul.f32 %v274, %v269
    %v287 = vmul.f32 %v274, %v270
    %v288 = vmul.f32 %v274, %v271
    %v289 = vmul.f32 %v274, %v272
    %v290 = vmul.f32 %v274, %v273
    %v291 = vadd.f32 %v222, %v275
    %v292 = vadd.f32 %v223, %v276
    %v293 = vadd.f32 %v224, %v277
    %v294 = vadd.f32 %v225, %v278
    %v295 = vadd.f32 %v226, %v279
    %v296 = vadd.f32 %v227, %v280
    %v297 = vadd.f32 %v228, %v281
    %v298 = vadd.f32 %v229, %v282
    %v299 = vadd.f32 %v230, %v283
    %v300 = vadd.f32 %v231, %v284
    %v301 = vadd.f32 %v232, %v285
    %v302 = vadd.f32 %v233, %v286
    %v303 = vadd.f32 %v234, %v287
    %v304 = vadd.f32 %v235, %v288
    %v305 = vadd.f32 %v236, %v289
    %v306 = vadd.f32 %v237, %v290
    %v307 = vld [vmem:[%s5 + $0x1] sm:$0x1]
    %v308 = vmul.f32 %v274, %v307
    %v309 = vadd.f32 %v239, %v308
    %s310 = sld [smem:[#allocation2 + $0x2]]
    %s311 = scalar_lea.vmem [#allocation9], 128
    %v312 = vld [vmem:[%s311] sm:$0xf]
    %v313 = vld [vmem:[%s311 + $0x4] sm:$0xf]
    %v314 = vld [vmem:[%s311 + $0x8] sm:$0xf]
    %v315 = vld [vmem:[%s311 + $0xc] sm:$0xf]
    %v316 = vld [vmem:[%s311 + $0x10] sm:$0xf]
    %v317 = vld [vmem:[%s311 + $0x14] sm:$0xf]
    %v318 = vld [vmem:[%s311 + $0x18] sm:$0xf]
    %v319 = vld [vmem:[%s311 + $0x1c] sm:$0xf]
    %v320 = vld [vmem:[%s311 + $0x20] sm:$0xf]
    %v321 = vld [vmem:[%s311 + $0x24] sm:$0xf]
    %v322 = vld [vmem:[%s311 + $0x28] sm:$0xf]
    %v323 = vld [vmem:[%s311 + $0x2c] sm:$0xf]
    %v324 = vld [vmem:[%s311 + $0x30] sm:$0xf]
    %v325 = vld [vmem:[%s311 + $0x34] sm:$0xf]
    %v326 = vld [vmem:[%s311 + $0x38] sm:$0xf]
    %v327 = vld [vmem:[%s311 + $0x3c] sm:$0xf]
    %v328 = vunpack.c.l.bf16 %v312
    %v329 = vunpack.c.l.bf16 %v313
    %v330 = vunpack.c.l.bf16 %v314
    %v331 = vunpack.c.l.bf16 %v315
    %v332 = vunpack.c.l.bf16 %v316
    %v333 = vunpack.c.l.bf16 %v317
    %v334 = vunpack.c.l.bf16 %v318
    %v335 = vunpack.c.l.bf16 %v319
    %v336 = vunpack.c.l.bf16 %v320
    %v337 = vunpack.c.l.bf16 %v321
    %v338 = vunpack.c.l.bf16 %v322
    %v339 = vunpack.c.l.bf16 %v323
    %v340 = vunpack.c.l.bf16 %v324
    %v341 = vunpack.c.l.bf16 %v325
    %v342 = vunpack.c.l.bf16 %v326
    %v343 = vunpack.c.l.bf16 %v327
    %v344 = vstv %s310
    %v345 = vmul.f32 %v344, %v328
    %v346 = vmul.f32 %v344, %v329
    %v347 = vmul.f32 %v344, %v330
    %v348 = vmul.f32 %v344, %v331
    %v349 = vmul.f32 %v344, %v332
    %v350 = vmul.f32 %v344, %v333
    %v351 = vmul.f32 %v344, %v334
    %v352 = vmul.f32 %v344, %v335
    %v353 = vmul.f32 %v344, %v336
    %v354 = vmul.f32 %v344, %v337
    %v355 = vmul.f32 %v344, %v338
    %v356 = vmul.f32 %v344, %v339
    %v357 = vmul.f32 %v344, %v340
    %v358 = vmul.f32 %v344, %v341
    %v359 = vmul.f32 %v344, %v342
    %v360 = vmul.f32 %v344, %v343
    %v361 = vadd.f32 %v291, %v345
    %v362 = vadd.f32 %v292, %v346
    %v363 = vadd.f32 %v293, %v347
    %v364 = vadd.f32 %v294, %v348
    %v365 = vadd.f32 %v295, %v349
    %v366 = vadd.f32 %v296, %v350
    %v367 = vadd.f32 %v297, %v351
    %v368 = vadd.f32 %v298, %v352
    %v369 = vadd.f32 %v299, %v353
    %v370 = vadd.f32 %v300, %v354
    %v371 = vadd.f32 %v301, %v355
    %v372 = vadd.f32 %v302, %v356
    %v373 = vadd.f32 %v303, %v357
    %v374 = vadd.f32 %v304, %v358
    %v375 = vadd.f32 %v305, %v359
    %v376 = vadd.f32 %v306, %v360
    %v377 = vld [vmem:[%s5 + $0x2] sm:$0x1]
    %v378 = vmul.f32 %v344, %v377
    %v379 = vadd.f32 %v309, %v378
    %v380 = vpack.c.bf16 %v362, %v361
    %v381 = vpack.c.bf16 %v364, %v363
    %v382 = vpack.c.bf16 %v366, %v365
    %v383 = vpack.c.bf16 %v368, %v367
    %v384 = vpack.c.bf16 %v370, %v369
    %v385 = vpack.c.bf16 %v372, %v371
    %v386 = vpack.c.bf16 %v374, %v373
    %v387 = vpack.c.bf16 %v376, %v375
    %v388 = vlaneseq
    %v389 = vshrl.u32 %v388, 7
    %v390 = vsub.s32 0, %v389
    %v391 = vrot.slane %v379, %v390
    %392 = vmatprep.subr.bf16.mxu0 0
    %393 = vmatpush1.bf16.msra.mxu0 %v387
    %394 = vmatprep.subr.bf16.mxu0 0
    %395 = vmatpush1.bf16.msra.mxu0 %v386
    %396 = vmatprep.subr.bf16.mxu0 0
    %397 = vmatpush1.bf16.msra.mxu0 %v385
    %398 = vmatprep.subr.bf16.mxu0 0
    %399 = vmatpush1.bf16.msra.mxu0 %v384
    %400 = vmatprep.subr.bf16.mxu0 0
    %401 = vmatpush1.bf16.msra.mxu0 %v383
    %402 = vmatprep.subr.bf16.mxu0 0
    %403 = vmatpush1.bf16.msra.mxu0 %v382
    %404 = vmatprep.subr.bf16.mxu0 0
    %405 = vmatpush1.bf16.msra.mxu0 %v381
    %406 = vmatprep.subr.bf16.mxu0 0
    %407 = vmatpush1.bf16.msra.mxu0 %v380
    %408 = vmatprep.subr.bf16.mxu0 0
    %409 = vmatpush2.bf16.msra.mxu0 0
    %410 = vmatprep.subr.bf16.mxu0 0
    %411 = vmatpush2.bf16.msra.mxu0 0
    %412 = vmatprep.subr.bf16.mxu0 0
    %413 = vmatpush2.bf16.msra.mxu0 0
    %414 = vmatprep.subr.bf16.mxu0 0
    %415 = vmatpush2.bf16.msra.mxu0 0
    %416 = vmatprep.subr.bf16.mxu0 0
    %417 = vmatpush2.bf16.msra.mxu0 0
    %418 = vmatprep.subr.bf16.mxu0 0
    %419 = vmatpush2.bf16.msra.mxu0 0
    %420 = vmatprep.subr.bf16.mxu0 0
    %421 = vmatpush2.bf16.msra.mxu0 0
    %422 = vmatprep.subr.bf16.mxu0 0
    %423 = vmatpush2.bf16.msra.mxu0 0
    %424 = vmatprep.mubr.bf16.mxu0 0
    %425 = vmatmul.mubr.bf16.gmra.mxu0 %v187
    %v426 = vpop.f32.mrf.mxu0
    %v427 = vadd.f32 %v391, %v426
    %v428 = vpop.f32.mrf.mxu0
    %v429 = vpop.f32.mrf.mxu0
    %v430 = vpop.f32.mrf.mxu0
    %431 = vdwg.mxu0
    %432 = vst [vmem:[#allocation10] sm:$0xff] %v427
    // Predicated region
    $region42: #{tpu_custom_call.1} parent=1 // pred_check
      _
    $region43: #{tpu_custom_call.1} parent=1 // pred_check_branch
      %434 = sbr.rel (0) target = $region45
    $region44: #{tpu_custom_call.1} parent=1 // pred_region
      %s436 = ssub.s32 128, 128
      %437 = vsyncadd [#allocation4], %s436
      %s439 = sshll.u32 [#allocation10], 4
      %s440 = int_to_ptr.vmem [resolvable:$true] %s439
      %442 = dma.vmem_to_hbm [thread:$0]  %s440, 128, %s6, [#allocation4]
    $region45: #{tpu_custom_call.1} parent=1 // pred_fallthru
      _
    // Predicated region
    $region46: #{tpu_custom_call.1} parent=1 // pred_check
      _
    $region47: #{tpu_custom_call.1} parent=1 // pred_check_branch
      %444 = sbr.rel (0) target = $region49
    $region48: #{tpu_custom_call.1} parent=1 // pred_region
      %445 = dma.done [#allocation4], 128
    $region49: #{tpu_custom_call.1} parent=1 // pred_fallthru
      _
    %446 = vsyncpa [#allocation3], 1
    %447 = vsyncpa [#allocation8], 1
    %448 = vsyncpa [#allocation4], 1
    %449 = vsyncpa [#allocation5], 1

</llo_original>
